<compile_context>
chip_gen: v6e
topology: v6e:2x2x1
jax: 0.10.0
libtpu: 0.0.40
codegen_flags: <defaults>
</compile_context>

<pallas_src>
import functools

import jax
import jax.numpy as jnp
from jax.experimental import pallas as pl
from jax.experimental.pallas import tpu as pltpu


def _round_up(x, m):
    return ((x + m - 1) // m) * m


# ----------------------------------------------------------------------------
# Pallas kernel: fusion head + classifier + per-sample cross-entropy
# ----------------------------------------------------------------------------
def vqa_head_kernel(labels_ref, text_ref, img_ref,
                    w1_ref, b1_ref, w2_ref, b2_ref,
                    logits_ref, loss_ref, *, num_labels):
    # Activations / weights arrive in bf16; accumulate in f32 on the MXU.
    x = jnp.concatenate([text_ref[...], img_ref[...]], axis=-1)   # (TB, Ht+Hi) bf16

    # fusion = Linear(concat) -> ReLU ; nn.Dropout(0.5) is identity in eval mode.
    fused = jnp.dot(x, w1_ref[...], preferred_element_type=jnp.float32) + b1_ref[...]
    fused = jnp.maximum(fused, 0.0)                               # (TB, D) f32

    # classifier (padded class columns have zero weight/bias -> logit 0, sliced
    # off in the wrapper).
    logits = (jnp.dot(fused.astype(jnp.bfloat16), w2_ref[...],
                      preferred_element_type=jnp.float32)
              + b2_ref[...])                                      # (TB, L_pad) f32
    logits_ref[...] = logits

    # Per-sample CrossEntropy: loss_i = logsumexp(logits_i[:L]) - logits_i[y_i].
    col = jax.lax.broadcasted_iota(jnp.int32, logits.shape, 1)    # (TB, L_pad)
    masked = jnp.where(col < num_labels, logits, -jnp.inf)        # mask padded cols
    m = jnp.max(masked, axis=-1, keepdims=True)
    lse = m + jnp.log(jnp.sum(jnp.exp(masked - m), axis=-1, keepdims=True))
    lbl = labels_ref[...]                                         # (TB, 1) int32
    picked = jnp.sum(jnp.where(col == lbl, logits, 0.0), axis=-1, keepdims=True)
    loss_ref[...] = lse - picked                                  # (TB, 1)


def vqa_head(text_pool, image_pool, labels, params, *, batch_tile=128):
    """Fusion head + classifier + CE loss in one batch-tiled Pallas call."""
    B, Ht = text_pool.shape
    Hi = image_pool.shape[1]
    w1, b1, w2, b2 = params["w1"], params["b1"], params["w2"], params["b2"]
    D = w1.shape[1]
    L = w2.shape[1]

    # --- padding to the (8, 128) vreg grain ------------------------------
    L_pad = _round_up(max(L, 1), 128)
    TB = min(batch_tile, _round_up(B, 8))
    B_pad = _round_up(B, TB)

    def pad_rows(a, n):
        return jnp.pad(a, ((0, n - a.shape[0]), (0, 0)))

    text_p = pad_rows(text_pool.astype(jnp.bfloat16), B_pad)      # (B_pad, Ht)
    img_p = pad_rows(image_pool.astype(jnp.bfloat16), B_pad)      # (B_pad, Hi)
    labels2d = pad_rows(labels.astype(jnp.int32).reshape(B, 1), B_pad)

    w1_bf = w1.astype(jnp.bfloat16)                               # (Ht+Hi, D)
    w2_bf = jnp.pad(w2, ((0, 0), (0, L_pad - L))).astype(jnp.bfloat16)
    b1_f = b1.reshape(1, D).astype(jnp.float32)
    b2_f = jnp.pad(b2.reshape(1, L), ((0, 0), (0, L_pad - L))).astype(jnp.float32)

    grid = (B_pad // TB,)

    # Rough VMEM budget: 2x double-buffered streamed blocks + resident weights,
    # plus headroom; clamped to stay safe on v7x (64 MiB physical VMEM).
    streamed = TB * (Ht + Hi) * 2 + TB * L_pad * 4 + TB * 4 * 2
    resident = (Ht + Hi) * D * 2 + D * 4 + D * L_pad * 2 + L_pad * 4
    vmem_limit = int(min(max((2 * streamed + resident) * 2 + (8 << 20), 16 << 20),
                         48 << 20))

    logits_pad, loss_vec = pl.pallas_call(
        functools.partial(vqa_head_kernel, num_labels=L),
        grid=grid,
        in_specs=[
            pl.BlockSpec((TB, 1),       lambda i: (i, 0)),   # labels
            pl.BlockSpec((TB, Ht),      lambda i: (i, 0)),   # text pooler output
            pl.BlockSpec((TB, Hi),      lambda i: (i, 0)),   # image pooler output
            pl.BlockSpec((Ht + Hi, D),  lambda i: (0, 0)),   # fusion weight (resident)
            pl.BlockSpec((1, D),        lambda i: (0, 0)),   # fusion bias
            pl.BlockSpec((D, L_pad),    lambda i: (0, 0)),   # classifier weight
            pl.BlockSpec((1, L_pad),    lambda i: (0, 0)),   # classifier bias
        ],
        out_specs=(
            pl.BlockSpec((TB, L_pad),   lambda i: (i, 0)),   # logits (lane-dense)
            pl.BlockSpec((TB, 1),       lambda i: (i, 0)),   # per-sample loss
        ),
        out_shape=(
            jax.ShapeDtypeStruct((B_pad, L_pad), jnp.float32),
            jax.ShapeDtypeStruct((B_pad, 1), jnp.float32),
        ),
        compiler_params=pltpu.CompilerParams(
            dimension_semantics=("parallel",),
            vmem_limit_bytes=vmem_limit),
    )(labels2d, text_p, img_p, w1_bf, b1_f, w2_bf, b2_f)

    logits = logits_pad[:B, :L]

    # CrossEntropyLoss(reduction='mean') over valid labels.  Negative labels
    # (PyTorch ignore_index=-100) are excluded from the mean.
    per_sample = loss_vec[:B, 0]
    valid = labels.astype(jnp.int32) >= 0
    count = jnp.maximum(jnp.sum(valid.astype(jnp.float32)), 1.0)
    loss = jnp.sum(jnp.where(valid, per_sample, 0.0)) / count
    return logits, loss


# ----------------------------------------------------------------------------
# Deterministic stand-in encoders (glue, plain JAX)
# ----------------------------------------------------------------------------
# TODO(synk): pretrained BERT / ViT transformer stacks have no clean in-script
# equivalent; they are replaced by deterministic stand-in pooler projections
# producing the same-shaped 'pooler_output' tensors consumed by the head.
def text_encoder_stub(input_ids, attention_mask, p):
    emb = p["tok_emb"][input_ids]                          # (B, S, Ht)
    mask = attention_mask[..., None].astype(jnp.float32)   # (B, S, 1)
    mean = (emb * mask).sum(axis=1) / jnp.maximum(mask.sum(axis=1), 1.0)
    return jnp.tanh(mean @ p["text_pool_w"] + p["text_pool_b"])  # (B, Ht)


def image_encoder_stub(pixel_values, p):
    # pixel_values: NCHW (PyTorch convention)
    B = pixel_values.shape[0]
    flat = pixel_values.reshape(B, -1).astype(jnp.float32)
    return jnp.tanh(flat @ p["img_pool_w"] + p["img_pool_b"])    # (B, Hi)


# ----------------------------------------------------------------------------
# Full forward (mirrors MultimodalVQAModel.forward)
# ----------------------------------------------------------------------------
def multimodal_vqa_forward(input_ids, pixel_values, attention_mask, labels, params):
    text_pool = text_encoder_stub(input_ids, attention_mask, params)
    image_pool = image_encoder_stub(pixel_values, params)
    logits, loss = vqa_head(text_pool, image_pool, labels, params)
    return {"logits": logits, "loss": loss}


# ----------------------------------------------------------------------------
# Parameter construction (deterministic)
# ----------------------------------------------------------------------------
def init_params(key, vocab, seq, text_hidden, image_hidden, chw,
                intermediate_dim, num_labels):
    c, h, w = chw
    ks = jax.random.split(key, 8)
    scale = 0.02
    return {
        "tok_emb":     scale * jax.random.normal(ks[0], (vocab, text_hidden), jnp.float32),
        "text_pool_w": scale * jax.random.normal(ks[1], (text_hidden, text_hidden), jnp.float32),
        "text_pool_b": jnp.zeros((text_hidden,), jnp.float32),
        "img_pool_w":  scale * jax.random.normal(ks[2], (c * h * w, image_hidden), jnp.float32),
        "img_pool_b":  jnp.zeros((image_hidden,), jnp.float32),
        # fusion Linear(text_hidden + image_hidden, intermediate_dim)
        "w1": scale * jax.random.normal(ks[3], (text_hidden + image_hidden,
                                                intermediate_dim), jnp.float32),
        "b1": jnp.zeros((intermediate_dim,), jnp.float32),
        # classifier Linear(intermediate_dim, num_labels)
        "w2": scale * jax.random.normal(ks[4], (intermediate_dim, num_labels), jnp.float32),
        "b2": jnp.zeros((num_labels,), jnp.float32),
    }


if __name__ == "__main__":
    # Small, module-consistent shapes. The reference module defaults
    # num_labels=0 (degenerate); we use a small nonzero class count.
    B, S, VOCAB = 4, 8, 100
    TEXT_HIDDEN, IMAGE_HIDDEN = 128, 128     # (real model: 768 / 768)
    INTERMEDIATE, NUM_LABELS = 128, 16       # (real model: 512 / num_labels)
    C, H, W = 3, 16, 16                      # NCHW pixel_values

    key = jax.random.PRNGKey(0)
    k_ids, k_pix, k_lbl, k_par = jax.random.split(key, 4)

    input_ids = jax.random.randint(k_ids, (B, S), 0, VOCAB, dtype=jnp.int32)
    attention_mask = jnp.ones((B, S), jnp.int32)
    pixel_values = jax.random.normal(k_pix, (B, C, H, W), jnp.float32)
    labels = jax.random.randint(k_lbl, (B,), 0, NUM_LABELS, dtype=jnp.int32)

    params = init_params(k_par, VOCAB, S, TEXT_HIDDEN, IMAGE_HIDDEN,
                         (C, H, W), INTERMEDIATE, NUM_LABELS)

    out = multimodal_vqa_forward(input_ids, pixel_values, attention_mask,
                                 labels, params)
    jax.block_until_ready(out["logits"])
    jax.block_until_ready(out["loss"])

    assert out["logits"].shape == (B, NUM_LABELS)
    assert out["loss"].shape == ()
    assert bool(jnp.isfinite(out["loss"]))
    print("KERNEL_OK")
</pallas_src>

<mosaic_0001>
module attributes {stable_mosaic.version = 11 : i64} {
  func.func @vqa_head_kernel(%arg0: i32, %arg1: memref<8x1xi32, #tpu.memory_space<vmem>>, %arg2: memref<8x128xbf16, #tpu.memory_space<vmem>>, %arg3: memref<8x128xbf16, #tpu.memory_space<vmem>>, %arg4: memref<256x128xbf16, #tpu.memory_space<vmem>>, %arg5: memref<1x128xf32, #tpu.memory_space<vmem>>, %arg6: memref<128x128xbf16, #tpu.memory_space<vmem>>, %arg7: memref<1x128xf32, #tpu.memory_space<vmem>>, %arg8: memref<8x128xf32, #tpu.memory_space<vmem>>, %arg9: memref<8x1xf32, #tpu.memory_space<vmem>>) attributes {dimension_semantics = [#tpu.dimension_semantics<parallel>], iteration_bounds = array<i64: 1>, scalar_prefetch = 0 : i64, scratch_operands = 0 : i64, tpu.core_type = #tpu.core_type<tc>, window_params = [{transform_indices = @transform_0, window_bounds = array<i64: 8, 1>}, {transform_indices = @transform_1, window_bounds = array<i64: 8, 128>}, {transform_indices = @transform_2, window_bounds = array<i64: 8, 128>}, {pipeline_mode = #tpu.pipeline_mode<synchronous>, transform_indices = @transform_3, window_bounds = array<i64: 256, 128>}, {pipeline_mode = #tpu.pipeline_mode<synchronous>, transform_indices = @transform_4, window_bounds = array<i64: 1, 128>}, {pipeline_mode = #tpu.pipeline_mode<synchronous>, transform_indices = @transform_5, window_bounds = array<i64: 128, 128>}, {pipeline_mode = #tpu.pipeline_mode<synchronous>, transform_indices = @transform_6, window_bounds = array<i64: 1, 128>}, {transform_indices = @transform_7, window_bounds = array<i64: 8, 128>}, {transform_indices = @transform_8, window_bounds = array<i64: 8, 1>}]} {
    %c0 = arith.constant 0 : index
    %c0_0 = arith.constant 0 : index
    %0 = vector.load %arg2[%c0, %c0_0] : memref<8x128xbf16, #tpu.memory_space<vmem>>, vector<8x128xbf16>
    %c0_1 = arith.constant 0 : index
    %c0_2 = arith.constant 0 : index
    %1 = vector.load %arg3[%c0_1, %c0_2] : memref<8x128xbf16, #tpu.memory_space<vmem>>, vector<8x128xbf16>
    %2 = tpu.concatenate %0, %1 in 1 : vector<8x128xbf16>, vector<8x128xbf16> -> vector<8x256xbf16>
    %c0_3 = arith.constant 0 : index
    %c0_4 = arith.constant 0 : index
    %3 = vector.load %arg4[%c0_3, %c0_4] : memref<256x128xbf16, #tpu.memory_space<vmem>>, vector<256x128xbf16>
    %cst = arith.constant dense<0.000000e+00> : vector<8x128xf32>
    %4 = tpu.matmul %2, %3, %cst {dimension_numbers = #tpu.dot_dimension_numbers<[1], [0], [0], [1], [0, 0, 1, 1], [], []>} : vector<8x256xbf16>, vector<256x128xbf16>, vector<8x128xf32> -> vector<8x128xf32>
    %c0_5 = arith.constant 0 : index
    %c0_6 = arith.constant 0 : index
    %5 = vector.load %arg5[%c0_5, %c0_6] : memref<1x128xf32, #tpu.memory_space<vmem>>, vector<1x128xf32>
    %6 = vector.broadcast %5 : vector<1x128xf32> to vector<8x128xf32>
    %7 = arith.addf %4, %6 : vector<8x128xf32>
    %cst_7 = arith.constant 0.000000e+00 : f32
    %8 = vector.broadcast %cst_7 : f32 to vector<8x128xf32>
    %9 = arith.maximumf %7, %8 : vector<8x128xf32>
    %10 = arith.truncf %9 : vector<8x128xf32> to vector<8x128xbf16>
    %c0_8 = arith.constant 0 : index
    %c0_9 = arith.constant 0 : index
    %11 = vector.load %arg6[%c0_8, %c0_9] : memref<128x128xbf16, #tpu.memory_space<vmem>>, vector<128x128xbf16>
    %cst_10 = arith.constant dense<0.000000e+00> : vector<8x128xf32>
    %12 = tpu.matmul %10, %11, %cst_10 {dimension_numbers = #tpu.dot_dimension_numbers<[1], [0], [0], [1], [0, 0, 1, 1], [], []>} : vector<8x128xbf16>, vector<128x128xbf16>, vector<8x128xf32> -> vector<8x128xf32>
    %c0_11 = arith.constant 0 : index
    %c0_12 = arith.constant 0 : index
    %13 = vector.load %arg7[%c0_11, %c0_12] : memref<1x128xf32, #tpu.memory_space<vmem>>, vector<1x128xf32>
    %14 = vector.broadcast %13 : vector<1x128xf32> to vector<8x128xf32>
    %15 = arith.addf %12, %14 : vector<8x128xf32>
    %c0_13 = arith.constant 0 : index
    %c0_14 = arith.constant 0 : index
    %16 = vector.load %arg8[%c0_13, %c0_14] : memref<8x128xf32, #tpu.memory_space<vmem>>, vector<8x128xf32>
    tpu.vector_store %arg8[%c0_13, %c0_14], %15 {strides = array<i32>} : memref<8x128xf32, #tpu.memory_space<vmem>>, vector<8x128xf32>,
    %17 = tpu.iota {dimensions = array<i32: 1>} : vector<8x128xi32>
    %c16_i32 = arith.constant 16 : i32
    %18 = vector.broadcast %c16_i32 : i32 to vector<8x128xi32>
    %19 = arith.cmpi slt, %17, %18 : vector<8x128xi32>
    %cst_15 = arith.constant 0xFF800000 : f32
    %20 = vector.broadcast %cst_15 : f32 to vector<8x128xf32>
    %21 = arith.select %19, %15, %20 : vector<8x128xi1>, vector<8x128xf32>
    %cst_16 = arith.constant dense<0xFF800000> : vector<8xf32>
    %22 = vector.multi_reduction <maximumf>, %21, %cst_16 [1] : vector<8x128xf32> to vector<8xf32>
    %23 = vector.shape_cast %22 : vector<8xf32> to vector<8x1xf32>
    %24 = vector.broadcast %23 : vector<8x1xf32> to vector<8x128xf32>
    %25 = arith.subf %21, %24 : vector<8x128xf32>
    %26 = math.exp %25 : vector<8x128xf32>
    %cst_17 = arith.constant dense<0.000000e+00> : vector<8xf32>
    %27 = vector.multi_reduction <add>, %26, %cst_17 [1] : vector<8x128xf32> to vector<8xf32>
    %28 = vector.shape_cast %27 : vector<8xf32> to vector<8x1xf32>
    %29 = math.log %28 : vector<8x1xf32>
    %30 = arith.addf %23, %29 : vector<8x1xf32>
    %c0_18 = arith.constant 0 : index
    %c0_19 = arith.constant 0 : index
    %31 = vector.load %arg1[%c0_18, %c0_19] : memref<8x1xi32, #tpu.memory_space<vmem>>, vector<8x1xi32>
    %32 = vector.broadcast %31 : vector<8x1xi32> to vector<8x128xi32>
    %33 = arith.cmpi eq, %17, %32 : vector<8x128xi32>
    %cst_20 = arith.constant 0.000000e+00 : f32
    %34 = vector.broadcast %cst_20 : f32 to vector<8x128xf32>
    %35 = arith.select %33, %15, %34 : vector<8x128xi1>, vector<8x128xf32>
    %cst_21 = arith.constant dense<0.000000e+00> : vector<8xf32>
    %36 = vector.multi_reduction <add>, %35, %cst_21 [1] : vector<8x128xf32> to vector<8xf32>
    %37 = vector.shape_cast %36 : vector<8xf32> to vector<8x1xf32>
    %38 = arith.subf %30, %37 : vector<8x1xf32>
    %c0_22 = arith.constant 0 : index
    %c0_23 = arith.constant 0 : index
    %39 = vector.load %arg9[%c0_22, %c0_23] : memref<8x1xf32, #tpu.memory_space<vmem>>, vector<8x1xf32>
    tpu.vector_store %arg9[%c0_22, %c0_23], %38 {strides = array<i32>} : memref<8x1xf32, #tpu.memory_space<vmem>>, vector<8x1xf32>,
    return
  }
  func.func @transform_0(%arg0: i32) -> (i32, i32) {
    %c0_i32 = arith.constant 0 : i32
    %c0_i32_0 = arith.constant 0 : i32
    return %arg0, %c0_i32 : i32, i32
  }
  func.func @transform_1(%arg0: i32) -> (i32, i32) {
    %c0_i32 = arith.constant 0 : i32
    %c0_i32_0 = arith.constant 0 : i32
    return %arg0, %c0_i32 : i32, i32
  }
  func.func @transform_2(%arg0: i32) -> (i32, i32) {
    %c0_i32 = arith.constant 0 : i32
    %c0_i32_0 = arith.constant 0 : i32
    return %arg0, %c0_i32 : i32, i32
  }
  func.func @transform_3(%arg0: i32) -> (i32, i32) {
    %c0_i32 = arith.constant 0 : i32
    %c0_i32_0 = arith.constant 0 : i32
    %c0_i32_1 = arith.constant 0 : i32
    return %c0_i32, %c0_i32_0 : i32, i32
  }
  func.func @transform_4(%arg0: i32) -> (i32, i32) {
    %c0_i32 = arith.constant 0 : i32
    %c0_i32_0 = arith.constant 0 : i32
    %c0_i32_1 = arith.constant 0 : i32
    return %c0_i32, %c0_i32_0 : i32, i32
  }
  func.func @transform_5(%arg0: i32) -> (i32, i32) {
    %c0_i32 = arith.constant 0 : i32
    %c0_i32_0 = arith.constant 0 : i32
    %c0_i32_1 = arith.constant 0 : i32
    return %c0_i32, %c0_i32_0 : i32, i32
  }
  func.func @transform_6(%arg0: i32) -> (i32, i32) {
    %c0_i32 = arith.constant 0 : i32
    %c0_i32_0 = arith.constant 0 : i32
    %c0_i32_1 = arith.constant 0 : i32
    return %c0_i32, %c0_i32_0 : i32, i32
  }
  func.func @transform_7(%arg0: i32) -> (i32, i32) {
    %c0_i32 = arith.constant 0 : i32
    %c0_i32_0 = arith.constant 0 : i32
    return %arg0, %c0_i32 : i32, i32
  }
  func.func @transform_8(%arg0: i32) -> (i32, i32) {
    %c0_i32 = arith.constant 0 : i32
    %c0_i32_0 = arith.constant 0 : i32
    return %arg0, %c0_i32 : i32, i32
  }
}

</mosaic_0001>

<llo_original>
// kernel: tpu_custom_call.1
$region0: #{tpu_custom_call.1}
  #allocation0 [shape = 'u32[]', space=smem, size = 0x4, offset = 0x4, fixed_abs, tag = 'smem constant byte address 0x4 - core index']
  #allocation1 [shape = 'u32[144,128]{1,0:T(1,128)}', space=vmem, size = 0x12000, scoped, tag = 'internal scratch']
  %s0 = inlined_call_operand.vmem [shape: s32[8,1], index: 0, kind: input, shape index: {}]
  %s1 = inlined_call_operand.vmem [shape: bf16[8,128], index: 1, kind: input, shape index: {}]
  %s2 = inlined_call_operand.vmem [shape: bf16[8,128], index: 2, kind: input, shape index: {}]
  %s3 = inlined_call_operand.hbm [shape: bf16[256,128], index: 3, kind: input, shape index: {}]
  %s4 = inlined_call_operand.vmem [shape: f32[1,128], index: 4, kind: input, shape index: {}]
  %s5 = inlined_call_operand.hbm [shape: bf16[128,128], index: 5, kind: input, shape index: {}]
  %s6 = inlined_call_operand.vmem [shape: f32[1,128], index: 6, kind: input, shape index: {}]
  %s7 = inlined_call_operand.hbm [shape: f32[8,128], index: 7, kind: output, shape index: {0}]
  %s8 = inlined_call_operand.vmem [shape: f32[8,1], index: 8, kind: output, shape index: {1}]
  %9 = xla_tuple %s7, %s8
  %s10 = sld [smem:[#allocation0]]
  $region54: #{tpu_custom_call.1} parent=0
    _
  %s12 = ssub.s32 1, %s10
  %s13 = scalar_select 0, %s12, %s10
  $region1: #{tpu_custom_call.1} parent=0
    #allocation2 [shape = 'u8[65536]{0}', space=vmem, size = 0x10000, scoped, tag = 'input window, operand 3, single buffered']
    #allocation3 [shape = 's32[1]{0}', space=sflag, size = 0x4, scoped, tag = 'scoped memory for tpu_custom_call.1']
    #allocation4 [shape = 's32[1]{0}', space=sflag, size = 0x4, scoped, tag = 'scoped memory for tpu_custom_call.1']
    #allocation5 [shape = 'u8[32768]{0}', space=vmem, size = 0x8000, scoped, tag = 'input window, operand 5, single buffered']
    #allocation6 [shape = 's32[1]{0}', space=sflag, size = 0x4, scoped, tag = 'scoped memory for tpu_custom_call.1']
    #allocation7 [shape = 'u8[4096]{0}', space=vmem, size = 0x1000, scoped, tag = 'output window, operand 0, single buffered']
    %14 = vsyncpa [#allocation3], 0
    %15 = vsyncpa [#allocation6], 0
    %16 = vsyncpa [#allocation4], 0
    // Predicated region
    $region2: #{tpu_custom_call.1} parent=1 // pred_check
      _
    $region3: #{tpu_custom_call.1} parent=1 // pred_check_branch
      %18 = sbr.rel (0) target = $region5
    $region4: #{tpu_custom_call.1} parent=1 // pred_region
      _
    $region5: #{tpu_custom_call.1} parent=1 // pred_fallthru
      _
    // Predicated region
    $region6: #{tpu_custom_call.1} parent=1 // pred_check
      _
    $region7: #{tpu_custom_call.1} parent=1 // pred_check_branch
      %20 = sbr.rel (0) target = $region9
    $region8: #{tpu_custom_call.1} parent=1 // pred_region
      _
    $region9: #{tpu_custom_call.1} parent=1 // pred_fallthru
      _
    // Predicated region
    $region10: #{tpu_custom_call.1} parent=1 // pred_check
      _
    $region11: #{tpu_custom_call.1} parent=1 // pred_check_branch
      %22 = sbr.rel (0) target = $region13
    $region12: #{tpu_custom_call.1} parent=1 // pred_region
      _
    $region13: #{tpu_custom_call.1} parent=1 // pred_fallthru
      _
    // Predicated region
    $region14: #{tpu_custom_call.1} parent=1 // pred_check
      _
    $region15: #{tpu_custom_call.1} parent=1 // pred_check_branch
      %24 = sbr.rel (0) target = $region17
    $region16: #{tpu_custom_call.1} parent=1 // pred_region
      %s26 = ssub.s32 2048, 2048
      %27 = vsyncadd [#allocation3], %s26
      %s28 = sshll.u32 [#allocation2], 4
      %s29 = int_to_ptr.vmem [resolvable:$true] %s28
      %34 = dma.hbm_to_vmem [thread:$0]  %s3, 2048, %s29, [#allocation3], 64, 64, 4
    $region17: #{tpu_custom_call.1} parent=1 // pred_fallthru
      _
    // Predicated region
    $region18: #{tpu_custom_call.1} parent=1 // pred_check
      _
    $region19: #{tpu_custom_call.1} parent=1 // pred_check_branch
      %36 = sbr.rel (0) target = $region21
    $region20: #{tpu_custom_call.1} parent=1 // pred_region
      _
    $region21: #{tpu_custom_call.1} parent=1 // pred_fallthru
      _
    // Predicated region
    $region22: #{tpu_custom_call.1} parent=1 // pred_check
      _
    $region23: #{tpu_custom_call.1} parent=1 // pred_check_branch
      %38 = sbr.rel (0) target = $region25
    $region24: #{tpu_custom_call.1} parent=1 // pred_region
      %s40 = ssub.s32 1024, 1024
      %41 = vsyncadd [#allocation6], %s40
      %s42 = sshll.u32 [#allocation5], 4
      %s43 = int_to_ptr.vmem [resolvable:$true] %s42
      %48 = dma.hbm_to_vmem [thread:$0]  %s5, 1024, %s43, [#allocation6], 64, 64, 4
    $region25: #{tpu_custom_call.1} parent=1 // pred_fallthru
      _
    // Predicated region
    $region26: #{tpu_custom_call.1} parent=1 // pred_check
      _
    $region27: #{tpu_custom_call.1} parent=1 // pred_check_branch
      %50 = sbr.rel (0) target = $region29
    $region28: #{tpu_custom_call.1} parent=1 // pred_region
      _
    $region29: #{tpu_custom_call.1} parent=1 // pred_fallthru
      _
    // Predicated region
    $region30: #{tpu_custom_call.1} parent=1 // pred_check
      _
    $region31: #{tpu_custom_call.1} parent=1 // pred_check_branch
      %52 = sbr.rel (0) target = $region33
    $region32: #{tpu_custom_call.1} parent=1 // pred_region
      %53 = dma.done [#allocation3], 2048
    $region33: #{tpu_custom_call.1} parent=1 // pred_fallthru
      _
    // Predicated region
    $region34: #{tpu_custom_call.1} parent=1 // pred_check
      _
    $region35: #{tpu_custom_call.1} parent=1 // pred_check_branch
      %55 = sbr.rel (0) target = $region37
    $region36: #{tpu_custom_call.1} parent=1 // pred_region
      %56 = dma.done [#allocation6], 1024
    $region37: #{tpu_custom_call.1} parent=1 // pred_fallthru
      _
    %v58 = vld [vmem:[%s1] sm:$0xf]
    %v59 = vld [vmem:[%s2] sm:$0xf]
    %v60 = vld [vmem:[#allocation2] sm:$0xf]
    %v61 = vld [vmem:[#allocation2 + $0x4] sm:$0xf]
    %v62 = vld [vmem:[#allocation2 + $0x8] sm:$0xf]
    %v63 = vld [vmem:[#allocation2 + $0xc] sm:$0xf]
    %v64 = vld [vmem:[#allocation2 + $0x10] sm:$0xf]
    %v65 = vld [vmem:[#allocation2 + $0x14] sm:$0xf]
    %v66 = vld [vmem:[#allocation2 + $0x18] sm:$0xf]
    %v67 = vld [vmem:[#allocation2 + $0x1c] sm:$0xf]
    %v68 = vld [vmem:[#allocation2 + $0x20] sm:$0xf]
    %v69 = vld [vmem:[#allocation2 + $0x24] sm:$0xf]
    %v70 = vld [vmem:[#allocation2 + $0x28] sm:$0xf]
    %v71 = vld [vmem:[#allocation2 + $0x2c] sm:$0xf]
    %v72 = vld [vmem:[#allocation2 + $0x30] sm:$0xf]
    %v73 = vld [vmem:[#allocation2 + $0x34] sm:$0xf]
    %v74 = vld [vmem:[#allocation2 + $0x38] sm:$0xf]
    %v75 = vld [vmem:[#allocation2 + $0x3c] sm:$0xf]
    %v76 = vld [vmem:[#allocation2 + $0x40] sm:$0xf]
    %v77 = vld [vmem:[#allocation2 + $0x44] sm:$0xf]
    %v78 = vld [vmem:[#allocation2 + $0x48] sm:$0xf]
    %v79 = vld [vmem:[#allocation2 + $0x4c] sm:$0xf]
    %v80 = vld [vmem:[#allocation2 + $0x50] sm:$0xf]
    %v81 = vld [vmem:[#allocation2 + $0x54] sm:$0xf]
    %v82 = vld [vmem:[#allocation2 + $0x58] sm:$0xf]
    %v83 = vld [vmem:[#allocation2 + $0x5c] sm:$0xf]
    %v84 = vld [vmem:[#allocation2 + $0x60] sm:$0xf]
    %v85 = vld [vmem:[#allocation2 + $0x64] sm:$0xf]
    %v86 = vld [vmem:[#allocation2 + $0x68] sm:$0xf]
    %v87 = vld [vmem:[#allocation2 + $0x6c] sm:$0xf]
    %v88 = vld [vmem:[#allocation2 + $0x70] sm:$0xf]
    %v89 = vld [vmem:[#allocation2 + $0x74] sm:$0xf]
    %v90 = vld [vmem:[#allocation2 + $0x78] sm:$0xf]
    %v91 = vld [vmem:[#allocation2 + $0x7c] sm:$0xf]
    %v92 = vld [vmem:[%s4] sm:$0x1]
    %v94 = vlaneseq
    %v95 = vshrl.u32 %v94, 7
    %v96 = vsub.s32 0, %v95
    %v97 = vrot.slane %v92, %v96
    %v131 = vunpack.c.l.b16 %v60
    %v132 = vunpack.c.l.b16 %v61
    %v133 = vunpack.c.l.b16 %v62
    %v134 = vunpack.c.l.b16 %v63
    %v135 = vunpack.c.l.b16 %v64
    %v136 = vunpack.c.l.b16 %v65
    %v137 = vunpack.c.l.b16 %v66
    %v138 = vunpack.c.l.b16 %v67
    %v139 = vunpack.c.l.b16 %v68
    %v140 = vunpack.c.l.b16 %v69
    %v141 = vunpack.c.l.b16 %v70
    %v142 = vunpack.c.l.b16 %v71
    %v143 = vunpack.c.l.b16 %v72
    %v144 = vunpack.c.l.b16 %v73
    %v145 = vunpack.c.l.b16 %v74
    %v146 = vunpack.c.l.b16 %v75
    %v147 = vunpack.c.l.b16 %v76
    %v148 = vunpack.c.l.b16 %v77
    %v149 = vunpack.c.l.b16 %v78
    %v150 = vunpack.c.l.b16 %v79
    %v151 = vunpack.c.l.b16 %v80
    %v152 = vunpack.c.l.b16 %v81
    %v153 = vunpack.c.l.b16 %v82
    %v154 = vunpack.c.l.b16 %v83
    %v155 = vunpack.c.l.b16 %v84
    %v156 = vunpack.c.l.b16 %v85
    %v157 = vunpack.c.l.b16 %v86
    %v158 = vunpack.c.l.b16 %v87
    %v159 = vunpack.c.l.b16 %v88
    %v160 = vunpack.c.l.b16 %v89
    %v161 = vunpack.c.l.b16 %v90
    %v162 = vunpack.c.l.b16 %v91
    %v163 = vpack.c.b16 %v132, %v131
    %v164 = vpack.c.b16 %v134, %v133
    %v165 = vpack.c.b16 %v136, %v135
    %v166 = vpack.c.b16 %v138, %v137
    %v167 = vpack.c.b16 %v140, %v139
    %v168 = vpack.c.b16 %v142, %v141
    %v169 = vpack.c.b16 %v144, %v143
    %v170 = vpack.c.b16 %v146, %v145
    %v171 = vpack.c.b16 %v148, %v147
    %v172 = vpack.c.b16 %v150, %v149
    %v173 = vpack.c.b16 %v152, %v151
    %v174 = vpack.c.b16 %v154, %v153
    %v175 = vpack.c.b16 %v156, %v155
    %v176 = vpack.c.b16 %v158, %v157
    %v177 = vpack.c.b16 %v160, %v159
    %v178 = vpack.c.b16 %v162, %v161
    %195 = vmatprep.subr.bf16.mxu0 0
    %196 = vmatpush1.bf16.msra.mxu0 %v170
    %197 = vmatprep.subr.bf16.mxu0 0
    %198 = vmatpush1.bf16.msra.mxu0 %v169
    %199 = vmatprep.subr.bf16.mxu0 0
    %200 = vmatpush1.bf16.msra.mxu0 %v168
    %201 = vmatprep.subr.bf16.mxu0 0
    %202 = vmatpush1.bf16.msra.mxu0 %v167
    %203 = vmatprep.subr.bf16.mxu0 0
    %204 = vmatpush1.bf16.msra.mxu0 %v166
    %205 = vmatprep.subr.bf16.mxu0 0
    %206 = vmatpush1.bf16.msra.mxu0 %v165
    %207 = vmatprep.subr.bf16.mxu0 0
    %208 = vmatpush1.bf16.msra.mxu0 %v164
    %209 = vmatprep.subr.bf16.mxu0 0
    %210 = vmatpush1.bf16.msra.mxu0 %v163
    %211 = vmatprep.subr.bf16.mxu0 0
    %212 = vmatpush2.bf16.msra.mxu0 %v178
    %213 = vmatprep.subr.bf16.mxu0 0
    %214 = vmatpush2.bf16.msra.mxu0 %v177
    %215 = vmatprep.subr.bf16.mxu0 0
    %216 = vmatpush2.bf16.msra.mxu0 %v176
    %217 = vmatprep.subr.bf16.mxu0 0
    %218 = vmatpush2.bf16.msra.mxu0 %v175
    %219 = vmatprep.subr.bf16.mxu0 0
    %220 = vmatpush2.bf16.msra.mxu0 %v174
    %221 = vmatprep.subr.bf16.mxu0 0
    %222 = vmatpush2.bf16.msra.mxu0 %v173
    %223 = vmatprep.subr.bf16.mxu0 0
    %224 = vmatpush2.bf16.msra.mxu0 %v172
    %225 = vmatprep.subr.bf16.mxu0 0
    %226 = vmatpush2.bf16.msra.mxu0 %v171
    %227 = vmatprep.mubr.bf16.mxu0 %v59
    %228 = vmatmul.mubr.bf16.gmra.mxu0 %v58
    %v229 = vpop.f32.mrf.mxu0
    %v230 = vadd.f32 %v97, %v229
    %v231 = vpop.f32.mrf.mxu0
    %v232 = vpop.f32.mrf.mxu0
    %v233 = vpop.f32.mrf.mxu0
    %234 = vdwg.mxu0
    %v235 = vmax.f32 %v230, 0.0
    %v236 = vpack.c.bf16 %v235, %v235
    %v237 = vld [vmem:[#allocation5] sm:$0xf]
    %v238 = vld [vmem:[#allocation5 + $0x4] sm:$0xf]
    %v239 = vld [vmem:[#allocation5 + $0x8] sm:$0xf]
    %v240 = vld [vmem:[#allocation5 + $0xc] sm:$0xf]
    %v241 = vld [vmem:[#allocation5 + $0x10] sm:$0xf]
    %v242 = vld [vmem:[#allocation5 + $0x14] sm:$0xf]
    %v243 = vld [vmem:[#allocation5 + $0x18] sm:$0xf]
    %v244 = vld [vmem:[#allocation5 + $0x1c] sm:$0xf]
    %v245 = vld [vmem:[#allocation5 + $0x20] sm:$0xf]
    %v246 = vld [vmem:[#allocation5 + $0x24] sm:$0xf]
    %v247 = vld [vmem:[#allocation5 + $0x28] sm:$0xf]
    %v248 = vld [vmem:[#allocation5 + $0x2c] sm:$0xf]
    %v249 = vld [vmem:[#allocation5 + $0x30] sm:$0xf]
    %v250 = vld [vmem:[#allocation5 + $0x34] sm:$0xf]
    %v251 = vld [vmem:[#allocation5 + $0x38] sm:$0xf]
    %v252 = vld [vmem:[#allocation5 + $0x3c] sm:$0xf]
    %v253 = vld [vmem:[%s6] sm:$0x1]
    %v255 = vlaneseq
    %v256 = vshrl.u32 %v255, 7
    %v257 = vsub.s32 0, %v256
    %v258 = vrot.slane %v253, %v257
    %v276 = vunpack.c.l.b16 %v237
    %v277 = vunpack.c.l.b16 %v238
    %v278 = vunpack.c.l.b16 %v239
    %v279 = vunpack.c.l.b16 %v240
    %v280 = vunpack.c.l.b16 %v241
    %v281 = vunpack.c.l.b16 %v242
    %v282 = vunpack.c.l.b16 %v243
    %v283 = vunpack.c.l.b16 %v244
    %v284 = vunpack.c.l.b16 %v245
    %v285 = vunpack.c.l.b16 %v246
    %v286 = vunpack.c.l.b16 %v247
    %v287 = vunpack.c.l.b16 %v248
    %v288 = vunpack.c.l.b16 %v249
    %v289 = vunpack.c.l.b16 %v250
    %v290 = vunpack.c.l.b16 %v251
    %v291 = vunpack.c.l.b16 %v252
    %v292 = vpack.c.b16 %v277, %v276
    %v293 = vpack.c.b16 %v279, %v278
    %v294 = vpack.c.b16 %v281, %v280
    %v295 = vpack.c.b16 %v283, %v282
    %v296 = vpack.c.b16 %v285, %v284
    %v297 = vpack.c.b16 %v287, %v286
    %v298 = vpack.c.b16 %v289, %v288
    %v299 = vpack.c.b16 %v291, %v290
    %308 = vmatprep.subr.bf16.mxu0 0
    %309 = vmatpush1.bf16.msra.mxu0 %v299
    %310 = vmatprep.subr.bf16.mxu0 0
    %311 = vmatpush1.bf16.msra.mxu0 %v298
    %312 = vmatprep.subr.bf16.mxu0 0
    %313 = vmatpush1.bf16.msra.mxu0 %v297
    %314 = vmatprep.subr.bf16.mxu0 0
    %315 = vmatpush1.bf16.msra.mxu0 %v296
    %316 = vmatprep.subr.bf16.mxu0 0
    %317 = vmatpush1.bf16.msra.mxu0 %v295
    %318 = vmatprep.subr.bf16.mxu0 0
    %319 = vmatpush1.bf16.msra.mxu0 %v294
    %320 = vmatprep.subr.bf16.mxu0 0
    %321 = vmatpush1.bf16.msra.mxu0 %v293
    %322 = vmatprep.subr.bf16.mxu0 0
    %323 = vmatpush1.bf16.msra.mxu0 %v292
    %324 = vmatprep.subr.bf16.mxu0 0
    %325 = vmatpush2.bf16.msra.mxu0 0
    %326 = vmatprep.subr.bf16.mxu0 0
    %327 = vmatpush2.bf16.msra.mxu0 0
    %328 = vmatprep.subr.bf16.mxu0 0
    %329 = vmatpush2.bf16.msra.mxu0 0
    %330 = vmatprep.subr.bf16.mxu0 0
    %331 = vmatpush2.bf16.msra.mxu0 0
    %332 = vmatprep.subr.bf16.mxu0 0
    %333 = vmatpush2.bf16.msra.mxu0 0
    %334 = vmatprep.subr.bf16.mxu0 0
    %335 = vmatpush2.bf16.msra.mxu0 0
    %336 = vmatprep.subr.bf16.mxu0 0
    %337 = vmatpush2.bf16.msra.mxu0 0
    %338 = vmatprep.subr.bf16.mxu0 0
    %339 = vmatpush2.bf16.msra.mxu0 0
    %340 = vmatprep.mubr.bf16.mxu0 0
    %341 = vmatmul.mubr.bf16.gmra.mxu0 %v236
    %v342 = vpop.f32.mrf.mxu0
    %v343 = vadd.f32 %v258, %v342
    %v344 = vpop.f32.mrf.mxu0
    %v345 = vpop.f32.mrf.mxu0
    %v346 = vpop.f32.mrf.mxu0
    %347 = vdwg.mxu0
    %348 = vst [vmem:[#allocation7] sm:$0xff] %v343
    %v349 = vlaneseq
    %v350 = vand.u32 %v349, 127
    %vm351 = vcmp.lt.s32.totalorder %v350, 16
    %v352 = vsel %vm351, %v343, -inf
    %353 = vmax.xlane.f32.xlu0 %v352
    %v354 = vpop.xlane.xlu0 %353
    %v355 = vsub.f32 %v352, %v354
    %v356 = vmul.f32 %v355, 1.442695
    %v357 = vpow.pop %v356
    %358 = vadd.xlane.f32.xlu0 %v357
    %v359 = vpop.xlane.xlu0 %358
    %v360 = vlog2.pop %v359
    %v361 = vmul.f32 %v360, 0.6931472
    %v362 = vadd.f32 %v354, %v361
    %v363 = vld [vmem:[%s0] sm:$0xff]
    %364 = vset.pattern.permute.xlu0 0
    %365 = vperm.xlu0 %364, %v363
    %v366 = vpop.permute.xlu0 %365
    %vm367 = vcmp.eq.s32.totalorder %v350, %v366
    %v368 = vsel %vm367, %v343, 0.0
    %369 = vadd.xlane.f32.xlu0 %v368
    %v370 = vpop.xlane.xlu0 %369
    %v371 = vsub.f32 %v362, %v370
    %vm372 = vcmask 7168
    %373 = vst.msk [vmem:[%s8] sm:$0xff] %vm372, %v371
    // Predicated region
    $region38: #{tpu_custom_call.1} parent=1 // pred_check
      _
    $region39: #{tpu_custom_call.1} parent=1 // pred_check_branch
      %375 = sbr.rel (0) target = $region41
    $region40: #{tpu_custom_call.1} parent=1 // pred_region
      %s377 = ssub.s32 128, 128
      %378 = vsyncadd [#allocation4], %s377
      %s380 = sshll.u32 [#allocation7], 4
      %s381 = int_to_ptr.vmem [resolvable:$true] %s380
      %383 = dma.vmem_to_hbm [thread:$0]  %s381, 128, %s7, [#allocation4]
    $region41: #{tpu_custom_call.1} parent=1 // pred_fallthru
      _
    // Predicated region
    $region42: #{tpu_custom_call.1} parent=1 // pred_check
      _
    $region43: #{tpu_custom_call.1} parent=1 // pred_check_branch
      %385 = sbr.rel (0) target = $region45
    $region44: #{tpu_custom_call.1} parent=1 // pred_region
      _
    $region45: #{tpu_custom_call.1} parent=1 // pred_fallthru
      _
    // Predicated region
    $region46: #{tpu_custom_call.1} parent=1 // pred_check
      _
    $region47: #{tpu_custom_call.1} parent=1 // pred_check_branch
      %387 = sbr.rel (0) target = $region49
    $region48: #{tpu_custom_call.1} parent=1 // pred_region
      %388 = dma.done [#allocation4], 128
    $region49: #{tpu_custom_call.1} parent=1 // pred_fallthru
      _
    // Predicated region
    $region50: #{tpu_custom_call.1} parent=1 // pred_check
      _
    $region51: #{tpu_custom_call.1} parent=1 // pred_check_branch
      %390 = sbr.rel (0) target = $region53
    $region52: #{tpu_custom_call.1} parent=1 // pred_region
      _
    $region53: #{tpu_custom_call.1} parent=1 // pred_fallthru
      _
    %391 = vsyncpa [#allocation3], 1
    %392 = vsyncpa [#allocation6], 1
    %393 = vsyncpa [#allocation4], 1

</llo_original>
